<compile_context>
chip_gen: v6e
topology: v6e:2x2x1
jax: 0.10.0
libtpu: 0.0.40
codegen_flags: <defaults>
</compile_context>

<pallas_src>
import functools

import numpy as np
import jax
import jax.numpy as jnp
from jax import lax
from jax.experimental import pallas as pl
from jax.experimental.pallas import tpu as pltpu


def _gat_kernel(alpha, ngenes, x_ref, w_ref, a_ref, adj_ref, hp_ref, attn_ref):
    n = ngenes
    cbn, _ = x_ref.shape                 # CB*N flattened cell-gene rows
    cb = cbn // n
    fout = w_ref.shape[1]

    # (1) Feature transform for the whole cell block: one 2-D MXU matmul
    #     (bf16 operands on v6e/v7x when use_bf16=True; f32 accumulation).
    hw2 = jnp.dot(x_ref[...], w_ref[...],
                  preferred_element_type=jnp.float32)        # (CB*N, Fout)
    hw = hw2.reshape(cb, n, fout)        # tile-aligned sublane split (N % 8 == 0)

    # (2) Attention projections on the VPU (no tiny per-cell MXU pushes):
    #     s1[c, m] = <a1[c], hW[c, m]>,  s2[c, m] = <a2[c], hW[c, m]>.
    a12 = a_ref[...]                                         # (CB, 2, Fout) f32
    s1 = jnp.sum(hw * a12[:, 0, :][:, None, :], axis=-1)     # lane reduce -> (CB, N)
    s2 = jnp.sum(hw * a12[:, 1, :][:, None, :], axis=-1)     # (CB, N)

    # (3) Exact reduction of the reference repeat/cat/view/einsum + [:, -1, :]
    #     block (valid for any N >= 2):
    #         e[c, q] = s1[c, (2q) % N] + s2[c, (2q+1) % N].
    #     The fixed permutation is applied as two one-hot (N, N) matmuls on the
    #     MXU (idle at this point) instead of (CB, N, N) VALU where-temporaries.
    src = lax.broadcasted_iota(jnp.int32, (n, n), 0)         # source index m (sublane)
    dst = lax.broadcasted_iota(jnp.int32, (n, n), 1)         # target index q (lane)
    t1 = 2 * dst
    t1 = jnp.where(t1 >= n, t1 - n, t1)                      # (2q) % N   (no i32 rem)
    t2 = 2 * dst + 1
    t2 = jnp.where(t2 >= n, t2 - n, t2)                      # (2q+1) % N
    sel1 = (src == t1).astype(jnp.float32)                   # Sel1[m, q]
    sel2 = (src == t2).astype(jnp.float32)                   # Sel2[m, q]
    e = (jnp.dot(s1, sel1, preferred_element_type=jnp.float32)
         + jnp.dot(s2, sel2, preferred_element_type=jnp.float32))   # (CB, N)

    e = jnp.where(e > 0, e, alpha * e)                        # LeakyReLU(alpha), f32

    # (4) Adjacency mask + softmax over N on the lane axis (all f32).  Keep the
    #     -9e15 fill so an all-masked row still yields uniform attention
    #     (matches the reference; a fully multiplicative mask would give 0/0).
    adj_f = adj_ref[...].astype(jnp.float32)                  # int8 {0,1} -> f32
    masked = jnp.where(adj_f > 0, e, jnp.float32(-9e15))
    row_max = jnp.max(masked, axis=-1, keepdims=True)
    p = jnp.exp(masked - row_max)
    # Exact divide keeps us bit-close to the torch reference;
    # pl.reciprocal(denom, approx=True) is the free EUP-slot variant at scale.
    attn = p / jnp.sum(p, axis=-1, keepdims=True)             # (CB, N)
    # TODO(synk): F.dropout(attention, p, training=True) is stochastic; this is
    # the eval-mode / p = 0.0 identity path.
    attn_ref[...] = attn                                      # dense (CB, N) store

    # (5) h_prime[c, f] = sum_n attn[c, n] * hW[c, n, f]: VPU broadcast-multiply
    #     + sublane reduce (replaces the batched M=1 MXU matmul).
    hp_ref[...] = jnp.sum(attn[:, :, None] * hw, axis=1)      # dense (CB, Fout) store


_VMEM_BUDGET_BYTES = 24 * 1024 * 1024     # keep per-block residency well under the
_VMEM_LIMIT_BYTES = 32 * 1024 * 1024      # 32 MiB scoped limit (safe on v5e..v7x)


def _block_vmem_bytes(cb, n, fin, fout, x_itemsize):
    """Rough per-grid-step VMEM residency: double-buffered I/O + live temporaries."""
    f32 = 4
    dbuf_in = 2 * (cb * n * fin * x_itemsize + cb * 2 * fout * f32 + cb * n * 1)
    weights = 2 * fin * fout * x_itemsize
    dbuf_out = 2 * (cb * fout * f32 + cb * n * f32)
    temps = 2 * cb * n * fout * f32 + 2 * n * n * f32 + 8 * cb * n * f32
    return dbuf_in + weights + dbuf_out + temps


def _pick_num_blocks(C, n, fin, fout, x_itemsize):
    nb = 1
    try:
        kind = jax.devices()[0].device_kind.lower()
    except Exception:
        kind = ""
    if "v7" in kind:
        nb = 2          # two TensorCores on v7x: shard the "parallel" cell axis
    # Grow only if a block would not fit the VMEM budget (production C, N).
    while nb < C and _block_vmem_bytes(C // nb, n, fin, fout, x_itemsize) > _VMEM_BUDGET_BYTES:
        nb *= 2
    # Cell blocks must stay sublane-aligned for every operand dtype
    # (f32: 8 rows, int8 adj: 32 rows); otherwise run as one full-array block.
    if C % nb != 0 or (nb > 1 and (C // nb) % 32 != 0):
        nb = 1
    return nb


def graph_attention_forward(x, W, a, adj, *, alpha, num_blocks=None, use_bf16=False):
    C, N, Fin = x.shape
    Fout = W.shape[1]

    mxu_dtype = jnp.bfloat16 if use_bf16 else jnp.float32
    x2d = x.reshape(C * N, Fin).astype(mxu_dtype)             # wrapper-side flatten (free)
    Wk = W.astype(mxu_dtype)
    a12 = a.reshape(C, 2, Fout).astype(jnp.float32)           # a1 = [:,0,:], a2 = [:,1,:]
    adj_i8 = (adj.reshape(C, N) > 0).astype(jnp.int8)         # 4x smaller adj DMA stream

    if num_blocks is None:
        num_blocks = _pick_num_blocks(C, N, Fin, Fout, jnp.dtype(mxu_dtype).itemsize)
    if C % num_blocks != 0 or C < num_blocks:
        num_blocks = 1
    CB = C // num_blocks

    kernel = functools.partial(_gat_kernel, float(alpha), N)
    h_prime, attention = pl.pallas_call(
        kernel,
        grid=(num_blocks,),
        in_specs=[
            pl.BlockSpec((CB * N, Fin), lambda c: (c, 0)),     # x, flattened rows
            pl.BlockSpec((Fin, Fout), lambda c: (0, 0)),       # W (shared)
            pl.BlockSpec((CB, 2, Fout), lambda c: (c, 0, 0)),  # a -> a1 / a2
            pl.BlockSpec((CB, N), lambda c: (c, 0)),           # adj mask (int8)
        ],
        out_specs=[
            pl.BlockSpec((CB, Fout), lambda c: (c, 0)),        # h_prime, dense 2-D
            pl.BlockSpec((CB, N), lambda c: (c, 0)),           # attention, dense 2-D
        ],
        out_shape=[
            jax.ShapeDtypeStruct((C, Fout), jnp.float32),
            jax.ShapeDtypeStruct((C, N), jnp.float32),
        ],
        compiler_params=pltpu.CompilerParams(
            dimension_semantics=("parallel",),                 # sharded across TCs on v7x
            vmem_limit_bytes=_VMEM_LIMIT_BYTES,
        ),
    )(x2d, Wk, a12, adj_i8)

    # Restore the module's output shapes (free reshapes in XLA).
    return h_prime.reshape(C, 1, Fout), attention.reshape(C, 1, N)


def graph_attention_ref(x, W, a, adj, alpha):
    """Pure-JAX transliteration of the PyTorch forward (for verification)."""
    C, N, Fin = x.shape
    Fout = W.shape[1]
    hi = jax.lax.Precision.HIGHEST
    hW = jnp.einsum('cnf,fg->cng', x, W, precision=hi)
    part1 = jnp.tile(hW, (1, 1, N)).reshape(C, N * N, Fout)
    part2 = jnp.tile(hW, (1, N, 1))
    a_input = jnp.concatenate([part1, part2], axis=1).reshape(C, N, N, 2 * Fout)
    e_input = jnp.einsum('ab,acdb->acd', a, a_input, precision=hi)
    e_input = e_input[:, -1, :]
    e = jnp.where(e_input > 0, e_input, alpha * e_input).reshape(C, 1, N)
    attention = jnp.where(adj > 0, e, -9e15)
    attention = jax.nn.softmax(attention, axis=2)
    h_prime = jnp.einsum('cik,ckf->cif', attention, hW, precision=hi)
    return h_prime, attention


if __name__ == "__main__":
    C, N, Fin, Fout = 4, 16, 8, 32      # ncells, ngenes, in_features, out_features
    alpha = 0.2
    dropout = 0.0                        # identity dropout (eval / p=0)

    key = jax.random.PRNGKey(0)
    kx, kadj, kw, ka = jax.random.split(key, 4)

    x = jax.random.normal(kx, (C, N, Fin), dtype=jnp.float32)
    adj = (jax.random.uniform(kadj, (C, 1, N)) > 0.3).astype(jnp.float32)

    # Deterministic xavier_uniform-style init (gain=1.414), matching param shapes.
    gain = 1.414
    wb = gain * np.sqrt(6.0 / (Fin + Fout))
    W = jax.random.uniform(kw, (Fin, Fout), jnp.float32, -wb, wb)
    ab = gain * np.sqrt(6.0 / (C + 2 * Fout))
    a = jax.random.uniform(ka, (C, 2 * Fout), jnp.float32, -ab, ab)

    h_exp, attn_exp = graph_attention_ref(x, W, a, adj, alpha)

    # f32 path (default; keeps tight parity with the torch reference).
    fwd = jax.jit(functools.partial(graph_attention_forward, alpha=alpha))
    h_prime, attention = fwd(x, W, a, adj)
    jax.block_until_ready((h_prime, attention))
    np.testing.assert_allclose(np.asarray(h_prime), np.asarray(h_exp),
                               rtol=2e-3, atol=3e-3)
    np.testing.assert_allclose(np.asarray(attention), np.asarray(attn_exp),
                               rtol=2e-3, atol=3e-3)
    assert h_prime.shape == (C, 1, Fout) and attention.shape == (C, 1, N)

    # bf16 MXU-operand path (recommended on v6e/v7x at production sizes);
    # the mask / LeakyReLU / softmax pipeline stays f32 inside the kernel.
    fwd_bf16 = jax.jit(functools.partial(graph_attention_forward,
                                         alpha=alpha, use_bf16=True))
    h_bf16, attn_bf16 = fwd_bf16(x, W, a, adj)
    jax.block_until_ready((h_bf16, attn_bf16))
    np.testing.assert_allclose(np.asarray(h_bf16), np.asarray(h_exp),
                               rtol=1e-1, atol=5e-2)
    np.testing.assert_allclose(np.asarray(attn_bf16), np.asarray(attn_exp),
                               rtol=1e-1, atol=5e-2)

    # NOTE: the e[c,q] = s1[(2q)%N] + s2[(2q+1)%N] reduction is exact for any
    # N >= 2; test additional (odd / large) N before trusting production shapes.

    print("KERNEL_OK")
</pallas_src>

<mosaic_0001>
module attributes {stable_mosaic.version = 11 : i64} {
  func.func @_gat_kernel(%arg0: i32, %arg1: memref<64x8xf32, #tpu.memory_space<vmem>>, %arg2: memref<8x32xf32, #tpu.memory_space<vmem>>, %arg3: memref<4x2x32xf32, #tpu.memory_space<vmem>>, %arg4: memref<4x16xi8, #tpu.memory_space<vmem>>, %arg5: memref<4x32xf32, #tpu.memory_space<vmem>>, %arg6: memref<4x16xf32, #tpu.memory_space<vmem>>) attributes {dimension_semantics = [#tpu.dimension_semantics<parallel>], iteration_bounds = array<i64: 1>, scalar_prefetch = 0 : i64, scratch_operands = 0 : i64, tpu.core_type = #tpu.core_type<tc>, window_params = [{transform_indices = @transform_0, window_bounds = array<i64: 64, 8>}, {pipeline_mode = #tpu.pipeline_mode<synchronous>, transform_indices = @transform_1, window_bounds = array<i64: 8, 32>}, {transform_indices = @transform_2, window_bounds = array<i64: 4, 2, 32>}, {transform_indices = @transform_3, window_bounds = array<i64: 4, 16>}, {transform_indices = @transform_4, window_bounds = array<i64: 4, 32>}, {transform_indices = @transform_5, window_bounds = array<i64: 4, 16>}]} {
    %c0 = arith.constant 0 : index
    %c0_0 = arith.constant 0 : index
    %0 = vector.load %arg1[%c0, %c0_0] : memref<64x8xf32, #tpu.memory_space<vmem>>, vector<64x8xf32>
    %c0_1 = arith.constant 0 : index
    %c0_2 = arith.constant 0 : index
    %1 = vector.load %arg2[%c0_1, %c0_2] : memref<8x32xf32, #tpu.memory_space<vmem>>, vector<8x32xf32>
    %cst = arith.constant dense<0.000000e+00> : vector<64x32xf32>
    %2 = tpu.matmul %0, %1, %cst {dimension_numbers = #tpu.dot_dimension_numbers<[1], [0], [0], [1], [0, 0, 1, 1], [], []>} : vector<64x8xf32>, vector<8x32xf32>, vector<64x32xf32> -> vector<64x32xf32>
    %3 = vector.shape_cast %2 : vector<64x32xf32> to vector<4x16x32xf32>
    %c0_3 = arith.constant 0 : index
    %c0_4 = arith.constant 0 : index
    %c0_5 = arith.constant 0 : index
    %4 = vector.load %arg3[%c0_3, %c0_4, %c0_5] : memref<4x2x32xf32, #tpu.memory_space<vmem>>, vector<4x2x32xf32>
    %5 = vector.extract_strided_slice %4 {offsets = [0, 0, 0], sizes = [4, 1, 32], strides = [1, 1, 1]} : vector<4x2x32xf32> to vector<4x1x32xf32>
    %6 = vector.shape_cast %5 : vector<4x1x32xf32> to vector<4x32xf32>
    %7 = vector.shape_cast %6 : vector<4x32xf32> to vector<4x1x32xf32>
    %8 = vector.broadcast %7 : vector<4x1x32xf32> to vector<4x16x32xf32>
    %9 = arith.mulf %3, %8 : vector<4x16x32xf32>
    %cst_6 = arith.constant dense<0.000000e+00> : vector<4x16xf32>
    %10 = vector.multi_reduction <add>, %9, %cst_6 [2] : vector<4x16x32xf32> to vector<4x16xf32>
    %11 = vector.extract_strided_slice %4 {offsets = [0, 1, 0], sizes = [4, 1, 32], strides = [1, 1, 1]} : vector<4x2x32xf32> to vector<4x1x32xf32>
    %12 = vector.shape_cast %11 : vector<4x1x32xf32> to vector<4x32xf32>
    %13 = vector.shape_cast %12 : vector<4x32xf32> to vector<4x1x32xf32>
    %14 = vector.broadcast %13 : vector<4x1x32xf32> to vector<4x16x32xf32>
    %15 = arith.mulf %3, %14 : vector<4x16x32xf32>
    %cst_7 = arith.constant dense<0.000000e+00> : vector<4x16xf32>
    %16 = vector.multi_reduction <add>, %15, %cst_7 [2] : vector<4x16x32xf32> to vector<4x16xf32>
    %17 = tpu.iota {dimensions = array<i32: 0>} : vector<16x16xi32>
    %18 = tpu.iota {dimensions = array<i32: 1>} : vector<16x16xi32>
    %c2_i32 = arith.constant 2 : i32
    %19 = vector.broadcast %c2_i32 : i32 to vector<16x16xi32>
    %20 = arith.muli %19, %18 : vector<16x16xi32>
    %c16_i32 = arith.constant 16 : i32
    %21 = vector.broadcast %c16_i32 : i32 to vector<16x16xi32>
    %22 = arith.cmpi sge, %20, %21 : vector<16x16xi32>
    %c16_i32_8 = arith.constant 16 : i32
    %23 = vector.broadcast %c16_i32_8 : i32 to vector<16x16xi32>
    %24 = arith.subi %20, %23 : vector<16x16xi32>
    %25 = arith.select %22, %24, %20 : vector<16x16xi1>, vector<16x16xi32>
    %c2_i32_9 = arith.constant 2 : i32
    %26 = vector.broadcast %c2_i32_9 : i32 to vector<16x16xi32>
    %27 = arith.muli %26, %18 : vector<16x16xi32>
    %c1_i32 = arith.constant 1 : i32
    %28 = vector.broadcast %c1_i32 : i32 to vector<16x16xi32>
    %29 = arith.addi %27, %28 : vector<16x16xi32>
    %c16_i32_10 = arith.constant 16 : i32
    %30 = vector.broadcast %c16_i32_10 : i32 to vector<16x16xi32>
    %31 = arith.cmpi sge, %29, %30 : vector<16x16xi32>
    %c16_i32_11 = arith.constant 16 : i32
    %32 = vector.broadcast %c16_i32_11 : i32 to vector<16x16xi32>
    %33 = arith.subi %29, %32 : vector<16x16xi32>
    %34 = arith.select %31, %33, %29 : vector<16x16xi1>, vector<16x16xi32>
    %35 = arith.cmpi eq, %17, %25 : vector<16x16xi32>
    %36 = arith.extui %35 : vector<16x16xi1> to vector<16x16xi32>
    %37 = arith.sitofp %36 : vector<16x16xi32> to vector<16x16xf32>
    %38 = arith.cmpi eq, %17, %34 : vector<16x16xi32>
    %39 = arith.extui %38 : vector<16x16xi1> to vector<16x16xi32>
    %40 = arith.sitofp %39 : vector<16x16xi32> to vector<16x16xf32>
    %cst_12 = arith.constant dense<0.000000e+00> : vector<4x16xf32>
    %41 = tpu.matmul %10, %37, %cst_12 {dimension_numbers = #tpu.dot_dimension_numbers<[1], [0], [0], [1], [0, 0, 1, 1], [], []>} : vector<4x16xf32>, vector<16x16xf32>, vector<4x16xf32> -> vector<4x16xf32>
    %cst_13 = arith.constant dense<0.000000e+00> : vector<4x16xf32>
    %42 = tpu.matmul %16, %40, %cst_13 {dimension_numbers = #tpu.dot_dimension_numbers<[1], [0], [0], [1], [0, 0, 1, 1], [], []>} : vector<4x16xf32>, vector<16x16xf32>, vector<4x16xf32> -> vector<4x16xf32>
    %43 = arith.addf %41, %42 : vector<4x16xf32>
    %cst_14 = arith.constant 0.000000e+00 : f32
    %44 = vector.broadcast %cst_14 : f32 to vector<4x16xf32>
    %45 = arith.cmpf ogt, %43, %44 : vector<4x16xf32>
    %cst_15 = arith.constant 2.000000e-01 : f32
    %46 = vector.broadcast %cst_15 : f32 to vector<4x16xf32>
    %47 = arith.mulf %46, %43 : vector<4x16xf32>
    %48 = arith.select %45, %43, %47 : vector<4x16xi1>, vector<4x16xf32>
    %c0_16 = arith.constant 0 : index
    %c0_17 = arith.constant 0 : index
    %49 = vector.load %arg4[%c0_16, %c0_17] : memref<4x16xi8, #tpu.memory_space<vmem>>, vector<4x16xi8>
    %50 = arith.sitofp %49 : vector<4x16xi8> to vector<4x16xf32>
    %cst_18 = arith.constant 0.000000e+00 : f32
    %51 = vector.broadcast %cst_18 : f32 to vector<4x16xf32>
    %52 = arith.cmpf ogt, %50, %51 : vector<4x16xf32>
    %cst_19 = arith.constant -9.000000e+15 : f32
    %53 = vector.broadcast %cst_19 : f32 to vector<4x16xf32>
    %54 = arith.select %52, %48, %53 : vector<4x16xi1>, vector<4x16xf32>
    %cst_20 = arith.constant dense<0xFF800000> : vector<4xf32>
    %55 = vector.multi_reduction <maximumf>, %54, %cst_20 [1] : vector<4x16xf32> to vector<4xf32>
    %56 = vector.shape_cast %55 : vector<4xf32> to vector<4x1xf32>
    %57 = vector.broadcast %56 : vector<4x1xf32> to vector<4x16xf32>
    %58 = arith.subf %54, %57 : vector<4x16xf32>
    %59 = math.exp %58 : vector<4x16xf32>
    %cst_21 = arith.constant dense<0.000000e+00> : vector<4xf32>
    %60 = vector.multi_reduction <add>, %59, %cst_21 [1] : vector<4x16xf32> to vector<4xf32>
    %61 = vector.shape_cast %60 : vector<4xf32> to vector<4x1xf32>
    %62 = vector.broadcast %61 : vector<4x1xf32> to vector<4x16xf32>
    %63 = arith.divf %59, %62 : vector<4x16xf32>
    %c0_22 = arith.constant 0 : index
    %c0_23 = arith.constant 0 : index
    %64 = vector.load %arg6[%c0_22, %c0_23] : memref<4x16xf32, #tpu.memory_space<vmem>>, vector<4x16xf32>
    tpu.vector_store %arg6[%c0_22, %c0_23], %63 {strides = array<i32>} : memref<4x16xf32, #tpu.memory_space<vmem>>, vector<4x16xf32>,
    %65 = vector.shape_cast %63 : vector<4x16xf32> to vector<4x16x1xf32>
    %66 = vector.broadcast %65 : vector<4x16x1xf32> to vector<4x16x32xf32>
    %67 = arith.mulf %66, %3 : vector<4x16x32xf32>
    %cst_24 = arith.constant dense<0.000000e+00> : vector<4x32xf32>
    %68 = vector.multi_reduction <add>, %67, %cst_24 [1] : vector<4x16x32xf32> to vector<4x32xf32>
    %c0_25 = arith.constant 0 : index
    %c0_26 = arith.constant 0 : index
    %69 = vector.load %arg5[%c0_25, %c0_26] : memref<4x32xf32, #tpu.memory_space<vmem>>, vector<4x32xf32>
    tpu.vector_store %arg5[%c0_25, %c0_26], %68 {strides = array<i32>} : memref<4x32xf32, #tpu.memory_space<vmem>>, vector<4x32xf32>,
    return
  }
  func.func @transform_0(%arg0: i32) -> (i32, i32) {
    %c0_i32 = arith.constant 0 : i32
    %c0_i32_0 = arith.constant 0 : i32
    return %arg0, %c0_i32 : i32, i32
  }
  func.func @transform_1(%arg0: i32) -> (i32, i32) {
    %c0_i32 = arith.constant 0 : i32
    %c0_i32_0 = arith.constant 0 : i32
    %c0_i32_1 = arith.constant 0 : i32
    return %c0_i32, %c0_i32_0 : i32, i32
  }
  func.func @transform_2(%arg0: i32) -> (i32, i32, i32) {
    %c0_i32 = arith.constant 0 : i32
    %c0_i32_0 = arith.constant 0 : i32
    %c0_i32_1 = arith.constant 0 : i32
    return %arg0, %c0_i32, %c0_i32_0 : i32, i32, i32
  }
  func.func @transform_3(%arg0: i32) -> (i32, i32) {
    %c0_i32 = arith.constant 0 : i32
    %c0_i32_0 = arith.constant 0 : i32
    return %arg0, %c0_i32 : i32, i32
  }
  func.func @transform_4(%arg0: i32) -> (i32, i32) {
    %c0_i32 = arith.constant 0 : i32
    %c0_i32_0 = arith.constant 0 : i32
    return %arg0, %c0_i32 : i32, i32
  }
  func.func @transform_5(%arg0: i32) -> (i32, i32) {
    %c0_i32 = arith.constant 0 : i32
    %c0_i32_0 = arith.constant 0 : i32
    return %arg0, %c0_i32 : i32, i32
  }
}

</mosaic_0001>

<llo_original>
// kernel: graph_attention_forward.1
$region0: #{graph_attention_forward.1}
  #allocation0 [shape = 'u32[]', space=smem, size = 0x4, offset = 0x4, fixed_abs, tag = 'smem constant byte address 0x4 - core index']
  #allocation1 [shape = 'u32[144,128]{1,0:T(1,128)}', space=vmem, size = 0x12000, scoped, tag = 'internal scratch']
  %s0 = inlined_call_operand.vmem [shape: f32[64,8], index: 0, kind: input, shape index: {}]
  %s1 = inlined_call_operand.vmem [shape: f32[8,32], index: 1, kind: input, shape index: {}]
  %s2 = inlined_call_operand.vmem [shape: f32[4,2,32], index: 2, kind: input, shape index: {}]
  %s3 = inlined_call_operand.vmem [shape: s8[4,16], index: 3, kind: input, shape index: {}]
  %s4 = inlined_call_operand.hbm [shape: f32[4,32], index: 4, kind: output, shape index: {0}]
  %s5 = inlined_call_operand.hbm [shape: f32[4,16], index: 5, kind: output, shape index: {1}]
  %6 = xla_tuple %s4, %s5
  %s7 = sld [smem:[#allocation0]]
  $region34: #{graph_attention_forward.1} parent=0
    _
  %s9 = ssub.s32 1, %s7
  %s10 = scalar_select 0, %s9, %s7
  $region1: #{graph_attention_forward.1} parent=0
    #allocation2 [shape = 'u8[2048]{0}', space=vmem, size = 0x800, scoped, tag = 'output window, operand 0, single buffered']
    #allocation3 [shape = 's32[1]{0}', space=sflag, size = 0x4, scoped, tag = 'scoped memory for graph_attention_forward.1']
    #allocation4 [shape = 'u8[2048]{0}', space=vmem, size = 0x800, scoped, tag = 'output window, operand 1, single buffered']
    #allocation5 [shape = 's32[1]{0}', space=sflag, size = 0x4, scoped, tag = 'scoped memory for graph_attention_forward.1']
    %11 = vsyncpa [#allocation3], 0
    %12 = vsyncpa [#allocation5], 0
    // Predicated region
    $region2: #{graph_attention_forward.1} parent=1 // pred_check
      _
    $region3: #{graph_attention_forward.1} parent=1 // pred_check_branch
      %14 = sbr.rel (0) target = $region5
    $region4: #{graph_attention_forward.1} parent=1 // pred_region
      _
    $region5: #{graph_attention_forward.1} parent=1 // pred_fallthru
      _
    // Predicated region
    $region6: #{graph_attention_forward.1} parent=1 // pred_check
      _
    $region7: #{graph_attention_forward.1} parent=1 // pred_check_branch
      %16 = sbr.rel (0) target = $region9
    $region8: #{graph_attention_forward.1} parent=1 // pred_region
      _
    $region9: #{graph_attention_forward.1} parent=1 // pred_fallthru
      _
    // Predicated region
    $region10: #{graph_attention_forward.1} parent=1 // pred_check
      _
    $region11: #{graph_attention_forward.1} parent=1 // pred_check_branch
      %18 = sbr.rel (0) target = $region13
    $region12: #{graph_attention_forward.1} parent=1 // pred_region
      _
    $region13: #{graph_attention_forward.1} parent=1 // pred_fallthru
      _
    // Predicated region
    $region14: #{graph_attention_forward.1} parent=1 // pred_check
      _
    $region15: #{graph_attention_forward.1} parent=1 // pred_check_branch
      %20 = sbr.rel (0) target = $region17
    $region16: #{graph_attention_forward.1} parent=1 // pred_region
      _
    $region17: #{graph_attention_forward.1} parent=1 // pred_fallthru
      _
    %v21 = vld [vmem:[%s0] sm:$0xff]
    %v22 = vld [vmem:[%s0 + $0x8] sm:$0xff]
    %v23 = vld [vmem:[%s0 + $0x10] sm:$0xff]
    %v24 = vld [vmem:[%s0 + $0x18] sm:$0xff]
    %v25 = vld [vmem:[%s0 + $0x20] sm:$0xff]
    %v26 = vld [vmem:[%s0 + $0x28] sm:$0xff]
    %v27 = vld [vmem:[%s0 + $0x30] sm:$0xff]
    %v28 = vld [vmem:[%s0 + $0x38] sm:$0xff]
    %v29 = vld [vmem:[%s1] sm:$0xff]
    %vm30 = vcmask 64512
    %v32 = vsel %vm30, %v21, 0
    %v35 = vsel %vm30, %v22, 0
    %v38 = vsel %vm30, %v23, 0
    %v41 = vsel %vm30, %v24, 0
    %v44 = vsel %vm30, %v25, 0
    %v47 = vsel %vm30, %v26, 0
    %v50 = vsel %vm30, %v27, 0
    %v53 = vsel %vm30, %v28, 0
    %55 = vmatprep.subr.mxu0 0.0
    %56 = vmatpush1.msra.mxu0 0.0
    %57 = vmatprep.subr.mxu0 0.0
    %58 = vmatpush1.msra.mxu0 0.0
    %59 = vmatprep.subr.mxu0 0.0
    %60 = vmatpush1.msra.mxu0 0.0
    %61 = vmatprep.subr.mxu0 0.0
    %62 = vmatpush1.msra.mxu0 0.0
    %63 = vmatprep.subr.mxu0 0.0
    %64 = vmatpush1.msra.mxu0 0.0
    %65 = vmatprep.subr.mxu0 0.0
    %66 = vmatpush1.msra.mxu0 0.0
    %67 = vmatprep.subr.mxu0 0.0
    %68 = vmatpush1.msra.mxu0 0.0
    %69 = vmatprep.subr.mxu0 0.0
    %70 = vmatpush1.msra.mxu0 0.0
    %71 = vmatprep.subr.mxu0 0.0
    %72 = vmatpush1.msra.mxu0 0.0
    %73 = vmatprep.subr.mxu0 0.0
    %74 = vmatpush1.msra.mxu0 0.0
    %75 = vmatprep.subr.mxu0 0.0
    %76 = vmatpush1.msra.mxu0 0.0
    %77 = vmatprep.subr.mxu0 0.0
    %78 = vmatpush1.msra.mxu0 0.0
    %79 = vmatprep.subr.mxu0 0.0
    %80 = vmatpush1.msra.mxu0 0.0
    %81 = vmatprep.subr.mxu0 0.0
    %82 = vmatpush1.msra.mxu0 0.0
    %83 = vmatprep.subr.mxu0 0.0
    %84 = vmatpush1.msra.mxu0 0.0
    %85 = vmatprep.subr.mxu0 0.0
    %86 = vmatpush1.msra.mxu0 %v29
    %87 = vmatprep.subr.mxu0 0.0
    %88 = vmatpush2.msra.mxu0 0.0
    %89 = vmatprep.subr.mxu0 0.0
    %90 = vmatpush2.msra.mxu0 0.0
    %91 = vmatprep.subr.mxu0 0.0
    %92 = vmatpush2.msra.mxu0 0.0
    %93 = vmatprep.subr.mxu0 0.0
    %94 = vmatpush2.msra.mxu0 0.0
    %95 = vmatprep.subr.mxu0 0.0
    %96 = vmatpush2.msra.mxu0 0.0
    %97 = vmatprep.subr.mxu0 0.0
    %98 = vmatpush2.msra.mxu0 0.0
    %99 = vmatprep.subr.mxu0 0.0
    %100 = vmatpush2.msra.mxu0 0.0
    %101 = vmatprep.subr.mxu0 0.0
    %102 = vmatpush2.msra.mxu0 0.0
    %103 = vmatprep.subr.mxu0 0.0
    %104 = vmatpush2.msra.mxu0 0.0
    %105 = vmatprep.subr.mxu0 0.0
    %106 = vmatpush2.msra.mxu0 0.0
    %107 = vmatprep.subr.mxu0 0.0
    %108 = vmatpush2.msra.mxu0 0.0
    %109 = vmatprep.subr.mxu0 0.0
    %110 = vmatpush2.msra.mxu0 0.0
    %111 = vmatprep.subr.mxu0 0.0
    %112 = vmatpush2.msra.mxu0 0.0
    %113 = vmatprep.subr.mxu0 0.0
    %114 = vmatpush2.msra.mxu0 0.0
    %115 = vmatprep.subr.mxu0 0.0
    %116 = vmatpush2.msra.mxu0 0.0
    %117 = vmatprep.subr.mxu0 0.0
    %118 = vmatpush2.msra.mxu0 0.0
    %119 = vmatprep.mubr.f32.mxu0 0.0
    %120 = vmatmul.mubr.f32.gmra.mxu0 %v32
    %v121 = vpop.f32.mrf.mxu0
    %v122 = vadd.f32 0.0, %v121
    %v123 = vpop.f32.mrf.mxu0
    %124 = vmatprep.mubr.f32.mxu0 0.0
    %125 = vmatmul.mubr.f32.gmra.mxu0 %v35
    %v126 = vpop.f32.mrf.mxu0
    %v127 = vadd.f32 0.0, %v126
    %v128 = vpop.f32.mrf.mxu0
    %129 = vmatprep.mubr.f32.mxu0 0.0
    %130 = vmatmul.mubr.f32.gmra.mxu0 %v38
    %v131 = vpop.f32.mrf.mxu0
    %v132 = vadd.f32 0.0, %v131
    %v133 = vpop.f32.mrf.mxu0
    %134 = vmatprep.mubr.f32.mxu0 0.0
    %135 = vmatmul.mubr.f32.gmra.mxu0 %v41
    %v136 = vpop.f32.mrf.mxu0
    %v137 = vadd.f32 0.0, %v136
    %v138 = vpop.f32.mrf.mxu0
    %139 = vmatprep.mubr.f32.mxu0 0.0
    %140 = vmatmul.mubr.f32.gmra.mxu0 %v44
    %v141 = vpop.f32.mrf.mxu0
    %v142 = vadd.f32 0.0, %v141
    %v143 = vpop.f32.mrf.mxu0
    %144 = vmatprep.mubr.f32.mxu0 0.0
    %145 = vmatmul.mubr.f32.gmra.mxu0 %v47
    %v146 = vpop.f32.mrf.mxu0
    %v147 = vadd.f32 0.0, %v146
    %v148 = vpop.f32.mrf.mxu0
    %149 = vmatprep.mubr.f32.mxu0 0.0
    %150 = vmatmul.mubr.f32.gmra.mxu0 %v50
    %v151 = vpop.f32.mrf.mxu0
    %v152 = vadd.f32 0.0, %v151
    %v153 = vpop.f32.mrf.mxu0
    %154 = vmatprep.mubr.f32.mxu0 0.0
    %155 = vmatmul.mubr.f32.gmra.mxu0 %v53
    %v156 = vpop.f32.mrf.mxu0
    %v157 = vadd.f32 0.0, %v156
    %v158 = vpop.f32.mrf.mxu0
    %159 = vdwg.mxu0
    %v160 = vld [vmem:[%s2] sm:$0x3]
    %v161 = vld [vmem:[%s2 + $0x2] sm:$0x3]
    %v162 = vld [vmem:[%s2 + $0x4] sm:$0x3]
    %v163 = vld [vmem:[%s2 + $0x6] sm:$0x3]
    %v164 = vlaneseq
    %v165 = vshrl.u32 %v164, 7
    %v166 = vsub.s32 0, %v165
    %v167 = vrot.slane %v160, %v166
    %v168 = vlaneseq
    %v169 = vshrl.u32 %v168, 7
    %v170 = vsub.s32 0, %v169
    %v171 = vrot.slane %v161, %v170
    %v172 = vlaneseq
    %v173 = vshrl.u32 %v172, 7
    %v174 = vsub.s32 0, %v173
    %v175 = vrot.slane %v162, %v174
    %v176 = vlaneseq
    %v177 = vshrl.u32 %v176, 7
    %v178 = vsub.s32 0, %v177
    %v179 = vrot.slane %v163, %v178
    %v180 = vmul.f32 %v122, %v167
    %v181 = vmul.f32 %v127, %v167
    %v182 = vmul.f32 %v132, %v171
    %v183 = vmul.f32 %v137, %v171
    %v184 = vmul.f32 %v142, %v175
    %v185 = vmul.f32 %v147, %v175
    %v186 = vmul.f32 %v152, %v179
    %v187 = vmul.f32 %v157, %v179
    %vm188 = vcmask 261120
    %v189 = vsel %vm188, %v180, 0.0
    %190 = vadd.xlane.f32.xlu0 %v189
    %v191 = vpop.xlane.xlu0 %190
    %v192 = vsel %vm188, %v181, 0.0
    %193 = vadd.xlane.f32.xlu0 %v192
    %v194 = vpop.xlane.xlu0 %193
    %v195 = vsel %vm188, %v182, 0.0
    %196 = vadd.xlane.f32.xlu0 %v195
    %v197 = vpop.xlane.xlu0 %196
    %v198 = vsel %vm188, %v183, 0.0
    %199 = vadd.xlane.f32.xlu0 %v198
    %v200 = vpop.xlane.xlu0 %199
    %v201 = vsel %vm188, %v184, 0.0
    %202 = vadd.xlane.f32.xlu0 %v201
    %v203 = vpop.xlane.xlu0 %202
    %v204 = vsel %vm188, %v185, 0.0
    %205 = vadd.xlane.f32.xlu0 %v204
    %v206 = vpop.xlane.xlu0 %205
    %v207 = vsel %vm188, %v186, 0.0
    %208 = vadd.xlane.f32.xlu0 %v207
    %v209 = vpop.xlane.xlu0 %208
    %v210 = vsel %vm188, %v187, 0.0
    %211 = vadd.xlane.f32.xlu0 %v210
    %v212 = vpop.xlane.xlu0 %211
    %v213 = vlaneseq
    %v214 = vshrl.u32 %v213, 7
    %v215 = vsub.s32 1, %v214
    %v216 = vrot.slane %v160, %v215
    %v217 = vlaneseq
    %v218 = vshrl.u32 %v217, 7
    %v219 = vsub.s32 1, %v218
    %v220 = vrot.slane %v161, %v219
    %v221 = vlaneseq
    %v222 = vshrl.u32 %v221, 7
    %v223 = vsub.s32 1, %v222
    %v224 = vrot.slane %v162, %v223
    %v225 = vlaneseq
    %v226 = vshrl.u32 %v225, 7
    %v227 = vsub.s32 1, %v226
    %v228 = vrot.slane %v163, %v227
    %v229 = vmul.f32 %v122, %v216
    %v230 = vmul.f32 %v127, %v216
    %v231 = vmul.f32 %v132, %v220
    %v232 = vmul.f32 %v137, %v220
    %v233 = vmul.f32 %v142, %v224
    %v234 = vmul.f32 %v147, %v224
    %v235 = vmul.f32 %v152, %v228
    %v236 = vmul.f32 %v157, %v228
    %v237 = vsel %vm188, %v229, 0.0
    %238 = vadd.xlane.f32.xlu0 %v237
    %v239 = vpop.xlane.xlu0 %238
    %v240 = vsel %vm188, %v230, 0.0
    %241 = vadd.xlane.f32.xlu0 %v240
    %v242 = vpop.xlane.xlu0 %241
    %v243 = vsel %vm188, %v231, 0.0
    %244 = vadd.xlane.f32.xlu0 %v243
    %v245 = vpop.xlane.xlu0 %244
    %v246 = vsel %vm188, %v232, 0.0
    %247 = vadd.xlane.f32.xlu0 %v246
    %v248 = vpop.xlane.xlu0 %247
    %v249 = vsel %vm188, %v233, 0.0
    %250 = vadd.xlane.f32.xlu0 %v249
    %v251 = vpop.xlane.xlu0 %250
    %v252 = vsel %vm188, %v234, 0.0
    %253 = vadd.xlane.f32.xlu0 %v252
    %v254 = vpop.xlane.xlu0 %253
    %v255 = vsel %vm188, %v235, 0.0
    %256 = vadd.xlane.f32.xlu0 %v255
    %v257 = vpop.xlane.xlu0 %256
    %v258 = vsel %vm188, %v236, 0.0
    %259 = vadd.xlane.f32.xlu0 %v258
    %v260 = vpop.xlane.xlu0 %259
    %v261 = vlaneseq
    %v262 = vshrl.u32 %v261, 7
    %v263 = vadd.s32 %v262, 8
    %v264 = vlaneseq
    %v265 = vand.u32 %v264, 127
    %v266 = vmul.u32 %v265, 2
    %vm267 = vcmp.ge.s32.totalorder %v266, 16
    %v268 = vsub.s32 %v266, 16
    %v269 = vsel %vm267, %v268, %v266
    %v270 = vadd.s32 %v266, 1
    %vm271 = vcmp.ge.s32.totalorder %v270, 16
    %v272 = vsub.s32 %v270, 16
    %v273 = vsel %vm271, %v272, %v270
    %vm274 = vcmp.eq.s32.totalorder %v262, %v269
    %vm275 = vcmp.eq.s32.totalorder %v263, %v269
    %v276 = vsel %vm274, 1, 0
    %v277 = vsel %vm275, 1, 0
    %v278 = vcvt.s32.f32 %v276
    %v279 = vcvt.s32.f32 %v277
    %vm280 = vcmp.eq.s32.totalorder %v262, %v273
    %vm281 = vcmp.eq.s32.totalorder %v263, %v273
    %v282 = vsel %vm280, 1, 0
    %v283 = vsel %vm281, 1, 0
    %v284 = vcvt.s32.f32 %v282
    %v285 = vcvt.s32.f32 %v283
    %v294 = vlaneseq
    %v295 = vshrl.u32 %v294, 7
    %v296 = vsub.s32 %v265, %v295
    %v297 = vrot.slane %v239, %v296
    %v298 = vadd.s32 %v265, 4294967288
    %v299 = vlaneseq
    %v300 = vshrl.u32 %v299, 7
    %v301 = vsub.s32 %v298, %v300
    %v302 = vrot.slane %v242, %v301
    %vm303 = vcmask 130112
    %v304 = vsel %vm303, %v302, %v297
    %v305 = vlaneseq
    %v306 = vshrl.u32 %v305, 7
    %v307 = vsub.s32 %v265, %v306
    %v308 = vrot.slane %v245, %v307
    %v309 = vlaneseq
    %v310 = vshrl.u32 %v309, 7
    %v311 = vsub.s32 %v298, %v310
    %v312 = vrot.slane %v248, %v311
    %v313 = vsel %vm303, %v312, %v308
    %v314 = vlaneseq
    %v315 = vshrl.u32 %v314, 7
    %v316 = vsub.s32 %v265, %v315
    %v317 = vrot.slane %v251, %v316
    %v318 = vlaneseq
    %v319 = vshrl.u32 %v318, 7
    %v320 = vsub.s32 %v298, %v319
    %v321 = vrot.slane %v254, %v320
    %v322 = vsel %vm303, %v321, %v317
    %v323 = vlaneseq
    %v324 = vshrl.u32 %v323, 7
    %v325 = vsub.s32 %v265, %v324
    %v326 = vrot.slane %v257, %v325
    %v327 = vlaneseq
    %v328 = vshrl.u32 %v327, 7
    %v329 = vsub.s32 %v298, %v328
    %v330 = vrot.slane %v260, %v329
    %v331 = vsel %vm303, %v330, %v326
    %vm332 = vcmask 1041409
    %v333 = vsel %vm332, %v313, %v304
    %vm334 = vcmask 1042434
    %v335 = vsel %vm334, %v322, %v333
    %vm336 = vcmask 1043459
    %v337 = vsel %vm336, %v331, %v335
    %vm338 = vcmask 130048
    %v339 = vsel %vm338, %v337, 0
    %341 = vmatprep.subr.mxu0 0.0
    %342 = vmatpush1.msra.mxu0 0.0
    %343 = vmatprep.subr.mxu0 0.0
    %344 = vmatpush1.msra.mxu0 0.0
    %345 = vmatprep.subr.mxu0 0.0
    %346 = vmatpush1.msra.mxu0 0.0
    %347 = vmatprep.subr.mxu0 0.0
    %348 = vmatpush1.msra.mxu0 0.0
    %349 = vmatprep.subr.mxu0 0.0
    %350 = vmatpush1.msra.mxu0 0.0
    %351 = vmatprep.subr.mxu0 0.0
    %352 = vmatpush1.msra.mxu0 0.0
    %353 = vmatprep.subr.mxu0 0.0
    %354 = vmatpush1.msra.mxu0 0.0
    %355 = vmatprep.subr.mxu0 0.0
    %356 = vmatpush1.msra.mxu0 0.0
    %357 = vmatprep.subr.mxu0 0.0
    %358 = vmatpush1.msra.mxu0 0.0
    %359 = vmatprep.subr.mxu0 0.0
    %360 = vmatpush1.msra.mxu0 0.0
    %361 = vmatprep.subr.mxu0 0.0
    %362 = vmatpush1.msra.mxu0 0.0
    %363 = vmatprep.subr.mxu0 0.0
    %364 = vmatpush1.msra.mxu0 0.0
    %365 = vmatprep.subr.mxu0 0.0
    %366 = vmatpush1.msra.mxu0 0.0
    %367 = vmatprep.subr.mxu0 0.0
    %368 = vmatpush1.msra.mxu0 0.0
    %369 = vmatprep.subr.mxu0 0.0
    %370 = vmatpush1.msra.mxu0 %v285
    %371 = vmatprep.subr.mxu0 0.0
    %372 = vmatpush1.msra.mxu0 %v284
    %373 = vmatprep.subr.mxu0 0.0
    %374 = vmatpush2.msra.mxu0 0.0
    %375 = vmatprep.subr.mxu0 0.0
    %376 = vmatpush2.msra.mxu0 0.0
    %377 = vmatprep.subr.mxu0 0.0
    %378 = vmatpush2.msra.mxu0 0.0
    %379 = vmatprep.subr.mxu0 0.0
    %380 = vmatpush2.msra.mxu0 0.0
    %381 = vmatprep.subr.mxu0 0.0
    %382 = vmatpush2.msra.mxu0 0.0
    %383 = vmatprep.subr.mxu0 0.0
    %384 = vmatpush2.msra.mxu0 0.0
    %385 = vmatprep.subr.mxu0 0.0
    %386 = vmatpush2.msra.mxu0 0.0
    %387 = vmatprep.subr.mxu0 0.0
    %388 = vmatpush2.msra.mxu0 0.0
    %389 = vmatprep.subr.mxu0 0.0
    %390 = vmatpush2.msra.mxu0 0.0
    %391 = vmatprep.subr.mxu0 0.0
    %392 = vmatpush2.msra.mxu0 0.0
    %393 = vmatprep.subr.mxu0 0.0
    %394 = vmatpush2.msra.mxu0 0.0
    %395 = vmatprep.subr.mxu0 0.0
    %396 = vmatpush2.msra.mxu0 0.0
    %397 = vmatprep.subr.mxu0 0.0
    %398 = vmatpush2.msra.mxu0 0.0
    %399 = vmatprep.subr.mxu0 0.0
    %400 = vmatpush2.msra.mxu0 0.0
    %401 = vmatprep.subr.mxu0 0.0
    %402 = vmatpush2.msra.mxu0 0.0
    %403 = vmatprep.subr.mxu0 0.0
    %404 = vmatpush2.msra.mxu0 0.0
    %405 = vmatprep.mubr.f32.mxu0 0.0
    %406 = vmatmul.mubr.f32.gmra.mxu0 %v339
    %v407 = vpop.f32.mrf.mxu0
    %v408 = vadd.f32 0.0, %v407
    %v409 = vpop.f32.mrf.mxu0
    %410 = vdwg.mxu0
    %v419 = vlaneseq
    %v420 = vshrl.u32 %v419, 7
    %v421 = vsub.s32 %v265, %v420
    %v422 = vrot.slane %v191, %v421
    %v423 = vlaneseq
    %v424 = vshrl.u32 %v423, 7
    %v425 = vsub.s32 %v298, %v424
    %v426 = vrot.slane %v194, %v425
    %v427 = vsel %vm303, %v426, %v422
    %v428 = vlaneseq
    %v429 = vshrl.u32 %v428, 7
    %v430 = vsub.s32 %v265, %v429
    %v431 = vrot.slane %v197, %v430
    %v432 = vlaneseq
    %v433 = vshrl.u32 %v432, 7
    %v434 = vsub.s32 %v298, %v433
    %v435 = vrot.slane %v200, %v434
    %v436 = vsel %vm303, %v435, %v431
    %v437 = vlaneseq
    %v438 = vshrl.u32 %v437, 7
    %v439 = vsub.s32 %v265, %v438
    %v440 = vrot.slane %v203, %v439
    %v441 = vlaneseq
    %v442 = vshrl.u32 %v441, 7
    %v443 = vsub.s32 %v298, %v442
    %v444 = vrot.slane %v206, %v443
    %v445 = vsel %vm303, %v444, %v440
    %v446 = vlaneseq
    %v447 = vshrl.u32 %v446, 7
    %v448 = vsub.s32 %v265, %v447
    %v449 = vrot.slane %v209, %v448
    %v450 = vlaneseq
    %v451 = vshrl.u32 %v450, 7
    %v452 = vsub.s32 %v298, %v451
    %v453 = vrot.slane %v212, %v452
    %v454 = vsel %vm303, %v453, %v449
    %v455 = vsel %vm332, %v436, %v427
    %v456 = vsel %vm334, %v445, %v455
    %v457 = vsel %vm336, %v454, %v456
    %v458 = vsel %vm338, %v457, 0
    %460 = vmatprep.subr.mxu0 0.0
    %461 = vmatpush1.msra.mxu0 0.0
    %462 = vmatprep.subr.mxu0 0.0
    %463 = vmatpush1.msra.mxu0 0.0
    %464 = vmatprep.subr.mxu0 0.0
    %465 = vmatpush1.msra.mxu0 0.0
    %466 = vmatprep.subr.mxu0 0.0
    %467 = vmatpush1.msra.mxu0 0.0
    %468 = vmatprep.subr.mxu0 0.0
    %469 = vmatpush1.msra.mxu0 0.0
    %470 = vmatprep.subr.mxu0 0.0
    %471 = vmatpush1.msra.mxu0 0.0
    %472 = vmatprep.subr.mxu0 0.0
    %473 = vmatpush1.msra.mxu0 0.0
    %474 = vmatprep.subr.mxu0 0.0
    %475 = vmatpush1.msra.mxu0 0.0
    %476 = vmatprep.subr.mxu0 0.0
    %477 = vmatpush1.msra.mxu0 0.0
    %478 = vmatprep.subr.mxu0 0.0
    %479 = vmatpush1.msra.mxu0 0.0
    %480 = vmatprep.subr.mxu0 0.0
    %481 = vmatpush1.msra.mxu0 0.0
    %482 = vmatprep.subr.mxu0 0.0
    %483 = vmatpush1.msra.mxu0 0.0
    %484 = vmatprep.subr.mxu0 0.0
    %485 = vmatpush1.msra.mxu0 0.0
    %486 = vmatprep.subr.mxu0 0.0
    %487 = vmatpush1.msra.mxu0 0.0
    %488 = vmatprep.subr.mxu0 0.0
    %489 = vmatpush1.msra.mxu0 %v279
    %490 = vmatprep.subr.mxu0 0.0
    %491 = vmatpush1.msra.mxu0 %v278
    %492 = vmatprep.subr.mxu0 0.0
    %493 = vmatpush2.msra.mxu0 0.0
    %494 = vmatprep.subr.mxu0 0.0
    %495 = vmatpush2.msra.mxu0 0.0
    %496 = vmatprep.subr.mxu0 0.0
    %497 = vmatpush2.msra.mxu0 0.0
    %498 = vmatprep.subr.mxu0 0.0
    %499 = vmatpush2.msra.mxu0 0.0
    %500 = vmatprep.subr.mxu0 0.0
    %501 = vmatpush2.msra.mxu0 0.0
    %502 = vmatprep.subr.mxu0 0.0
    %503 = vmatpush2.msra.mxu0 0.0
    %504 = vmatprep.subr.mxu0 0.0
    %505 = vmatpush2.msra.mxu0 0.0
    %506 = vmatprep.subr.mxu0 0.0
    %507 = vmatpush2.msra.mxu0 0.0
    %508 = vmatprep.subr.mxu0 0.0
    %509 = vmatpush2.msra.mxu0 0.0
    %510 = vmatprep.subr.mxu0 0.0
    %511 = vmatpush2.msra.mxu0 0.0
    %512 = vmatprep.subr.mxu0 0.0
    %513 = vmatpush2.msra.mxu0 0.0
    %514 = vmatprep.subr.mxu0 0.0
    %515 = vmatpush2.msra.mxu0 0.0
    %516 = vmatprep.subr.mxu0 0.0
    %517 = vmatpush2.msra.mxu0 0.0
    %518 = vmatprep.subr.mxu0 0.0
    %519 = vmatpush2.msra.mxu0 0.0
    %520 = vmatprep.subr.mxu0 0.0
    %521 = vmatpush2.msra.mxu0 0.0
    %522 = vmatprep.subr.mxu0 0.0
    %523 = vmatpush2.msra.mxu0 0.0
    %524 = vmatprep.mubr.f32.mxu0 0.0
    %525 = vmatmul.mubr.f32.gmra.mxu0 %v458
    %v526 = vpop.f32.mrf.mxu0
    %v527 = vadd.f32 %v408, %v526
    %v528 = vpop.f32.mrf.mxu0
    %529 = vdwg.mxu0
    %vm530 = vcmp.gt.f32.partialorder %v527, 0.0
    %v531 = vmul.f32 %v527, 0.2
    %v532 = vsel %vm530, %v527, %v531
    %v533 = vld [vmem:[%s3] sm:$0x1]
    %v534 = vunpack.c.0.s8 %v533
    %v535 = vcvt.s32.f32 %v534
    %vm536 = vcmp.gt.f32.partialorder %v535, 0.0
    %v537 = vsel %vm536, %v532, -9e+15
    %vm538 = vcmask 125952
    %v539 = vsel %vm538, %v537, -inf
    %540 = vmax.xlane.f32.xlu0 %v539
    %v541 = vpop.xlane.xlu0 %540
    %v542 = vsub.f32 %v537, %v541
    %v543 = vmul.f32 %v542, 1.442695
    %v544 = vpow.pop %v543
    %v545 = vsel %vm538, %v544, 0.0
    %546 = vadd.xlane.f32.xlu0 %v545
    %v547 = vpop.xlane.xlu0 %546
    %v548 = vrcp.pop %v547
    %v549 = vmul.f32 %v544, %v548
    %550 = vst.msk [vmem:[#allocation4] sm:$0xf] %vm538, %v549
    %v551 = vlaneseq
    %v552 = vshrl.u32 %v551, 7
    %v553 = vsub.s32 0, %v552
    %v554 = vrot.slane %v549, %v553
    %556 = vbcast.lane.b32.xlu0 %v554, 256
    %v557 = vpop.permute.xlu0 %556
    %s559 = sor.u32 256, 8
    %560 = vbcast.lane.b32.xlu0 %v554, %s559
    %v561 = vpop.permute.xlu0 %560
    %v562 = vlaneseq
    %v563 = vshrl.u32 %v562, 7
    %v564 = vsub.s32 1, %v563
    %v565 = vrot.slane %v549, %v564
    %567 = vbcast.lane.b32.xlu0 %v565, 256
    %v568 = vpop.permute.xlu0 %567
    %s570 = sor.u32 256, 8
    %571 = vbcast.lane.b32.xlu0 %v565, %s570
    %v572 = vpop.permute.xlu0 %571
    %v573 = vlaneseq
    %v574 = vshrl.u32 %v573, 7
    %v575 = vsub.s32 2, %v574
    %v576 = vrot.slane %v549, %v575
    %578 = vbcast.lane.b32.xlu0 %v576, 256
    %v579 = vpop.permute.xlu0 %578
    %s581 = sor.u32 256, 8
    %582 = vbcast.lane.b32.xlu0 %v576, %s581
    %v583 = vpop.permute.xlu0 %582
    %v584 = vlaneseq
    %v585 = vshrl.u32 %v584, 7
    %v586 = vsub.s32 3, %v585
    %v587 = vrot.slane %v549, %v586
    %589 = vbcast.lane.b32.xlu0 %v587, 256
    %v590 = vpop.permute.xlu0 %589
    %s592 = sor.u32 256, 8
    %593 = vbcast.lane.b32.xlu0 %v587, %s592
    %v594 = vpop.permute.xlu0 %593
    %v595 = vmul.f32 %v557, %v122
    %v596 = vmul.f32 %v561, %v127
    %v597 = vmul.f32 %v568, %v132
    %v598 = vmul.f32 %v572, %v137
    %v599 = vmul.f32 %v579, %v142
    %v600 = vmul.f32 %v583, %v147
    %v601 = vmul.f32 %v590, %v152
    %v602 = vmul.f32 %v594, %v157
    %v603 = vsel %vm188, %v595, 0.0
    %v604 = vsel %vm188, %v596, 0.0
    %v605 = vadd.f32 %v603, %v604
    %v606 = vrot.slane %v605, 4
    %v607 = vadd.f32 %v605, %v606
    %v608 = vrot.slane %v607, 2
    %v609 = vadd.f32 %v607, %v608
    %v610 = vrot.slane %v609, 1
    %v611 = vadd.f32 %v609, %v610
    %v612 = vsel %vm188, %v597, 0.0
    %v613 = vsel %vm188, %v598, 0.0
    %v614 = vadd.f32 %v612, %v613
    %v615 = vrot.slane %v614, 4
    %v616 = vadd.f32 %v614, %v615
    %v617 = vrot.slane %v616, 2
    %v618 = vadd.f32 %v616, %v617
    %v619 = vrot.slane %v618, 1
    %v620 = vadd.f32 %v618, %v619
    %v621 = vsel %vm188, %v599, 0.0
    %v622 = vsel %vm188, %v600, 0.0
    %v623 = vadd.f32 %v621, %v622
    %v624 = vrot.slane %v623, 4
    %v625 = vadd.f32 %v623, %v624
    %v626 = vrot.slane %v625, 2
    %v627 = vadd.f32 %v625, %v626
    %v628 = vrot.slane %v627, 1
    %v629 = vadd.f32 %v627, %v628
    %v630 = vsel %vm188, %v601, 0.0
    %v631 = vsel %vm188, %v602, 0.0
    %v632 = vadd.f32 %v630, %v631
    %v633 = vrot.slane %v632, 4
    %v634 = vadd.f32 %v632, %v633
    %v635 = vrot.slane %v634, 2
    %v636 = vadd.f32 %v634, %v635
    %v637 = vrot.slane %v636, 1
    %v638 = vadd.f32 %v636, %v637
    %v643 = vsel %vm332, %v620, %v611
    %v644 = vsel %vm334, %v629, %v643
    %v645 = vsel %vm336, %v638, %v644
    %vm647 = vcmask 257024
    %648 = vst.msk [vmem:[#allocation2] sm:$0xf] %vm647, %v645
    // Predicated region
    $region18: #{graph_attention_forward.1} parent=1 // pred_check
      _
    $region19: #{graph_attention_forward.1} parent=1 // pred_check_branch
      %650 = sbr.rel (0) target = $region21
    $region20: #{graph_attention_forward.1} parent=1 // pred_region
      %s652 = ssub.s32 64, 64
      %653 = vsyncadd [#allocation3], %s652
      %s655 = sshll.u32 [#allocation2], 4
      %s656 = int_to_ptr.vmem [resolvable:$true] %s655
      %658 = dma.vmem_to_hbm [thread:$0]  %s656, 64, %s4, [#allocation3]
    $region21: #{graph_attention_forward.1} parent=1 // pred_fallthru
      _
    // Predicated region
    $region22: #{graph_attention_forward.1} parent=1 // pred_check
      _
    $region23: #{graph_attention_forward.1} parent=1 // pred_check_branch
      %660 = sbr.rel (0) target = $region25
    $region24: #{graph_attention_forward.1} parent=1 // pred_region
      %s662 = ssub.s32 64, 64
      %663 = vsyncadd [#allocation5], %s662
      %s665 = sshll.u32 [#allocation4], 4
      %s666 = int_to_ptr.vmem [resolvable:$true] %s665
      %668 = dma.vmem_to_hbm [thread:$0]  %s666, 64, %s5, [#allocation5]
    $region25: #{graph_attention_forward.1} parent=1 // pred_fallthru
      _
    // Predicated region
    $region26: #{graph_attention_forward.1} parent=1 // pred_check
      _
    $region27: #{graph_attention_forward.1} parent=1 // pred_check_branch
      %670 = sbr.rel (0) target = $region29
    $region28: #{graph_attention_forward.1} parent=1 // pred_region
      %671 = dma.done [#allocation3], 64
    $region29: #{graph_attention_forward.1} parent=1 // pred_fallthru
      _
    // Predicated region
    $region30: #{graph_attention_forward.1} parent=1 // pred_check
      _
    $region31: #{graph_attention_forward.1} parent=1 // pred_check_branch
      %673 = sbr.rel (0) target = $region33
    $region32: #{graph_attention_forward.1} parent=1 // pred_region
      %674 = dma.done [#allocation5], 64
    $region33: #{graph_attention_forward.1} parent=1 // pred_fallthru
      _
    %675 = vsyncpa [#allocation3], 1
    %676 = vsyncpa [#allocation5], 1

</llo_original>
